<compile_context>
chip_gen: v7x
topology: tpu7x:2x2x1
jax: 0.10.0
libtpu: 0.0.40
codegen_flags: <defaults>
</compile_context>

<pallas_src>
import jax
import jax.numpy as jnp
from jax.experimental import pallas as pl
from jax.experimental.pallas import tpu as pltpu

_LANE = 128


def _round_up(n, m):
    return ((n + m - 1) // m) * m


def _cdiv(a, b):
    return (a + b - 1) // b


def _vmem_capacity_bytes():
    try:
        return int(pltpu.get_tpu_info().vmem_capacity_bytes)
    except Exception:
        return 64 << 20  # conservative default (v7x per-TensorCore VMEM)


def _mean_kernel(x_ref, w_ref, b_ref, out_ref):
    # mean = x @ W_t + b : one [M,K] x [K,N] MXU contraction with f32 accumulation.
    out_ref[...] = (
        jnp.dot(x_ref[...], w_ref[...], preferred_element_type=jnp.float32)
        + b_ref[...]
    ).astype(out_ref.dtype)


def prepare_linear_params(weight, bias):
    """One-time parameter prep, OUTSIDE the per-call path.

    weight: [F_out, F_in] (PyTorch nn.Linear layout)  ->  w_t:   [F_in, F_out]
    bias:   [F_out]                                   ->  b_row: [1, F_out] f32
    """
    w_t = jnp.asarray(weight).T
    b_row = jnp.asarray(bias, dtype=jnp.float32).reshape(1, -1)
    return w_t, b_row


def diag_gaussian_forward(x, w_t, b_row, log_std, *,
                          std_x_coef=1.0, std_y_coef=0.5, tile_b=512):
    """Returns (action_mean [B, F_out], action_std [F_out])."""
    B, F_in = x.shape
    F_in_w, F_out = w_t.shape
    assert F_in_w == F_in and b_row.shape == (1, F_out)

    # std is O(F_out) and independent of x; plain JAX (XLA fuses it for free).
    action_std = (jax.nn.sigmoid(log_std.astype(jnp.float32) / float(std_x_coef))
                  * float(std_y_coef))

    out_dtype = x.dtype
    isz_x = jnp.dtype(x.dtype).itemsize
    isz_w = jnp.dtype(w_t.dtype).itemsize
    isz_o = jnp.dtype(out_dtype).itemsize
    sublane = max(8, 32 // isz_x)          # 8 rows f32 / 16 bf16 / 32 int8|fp8

    # --- VMEM budgeting (generation- and dtype-aware) --------------------------------
    vmem_cap = _vmem_capacity_bytes()
    # VMEM buffers round blocks up to (sublane, 128) tiles even when the HBM traffic
    # is unpadded, so budget with padded footprints.
    f_in_v = _round_up(F_in, _LANE)
    f_out_v = _round_up(F_out, _LANE)

    # Resident weight + bias. If the full weight would not fit, tile F_out in
    # 128-lane multiples (grid axis j); otherwise keep the whole weight resident.
    tile_n = F_out
    weight_budget = int(vmem_cap * 0.5)
    if isz_w * f_in_v * f_out_v + 4 * f_out_v > weight_budget and F_out > _LANE:
        tile_n = _LANE
        while 2 * tile_n < f_out_v and isz_w * f_in_v * (2 * tile_n) <= weight_budget:
            tile_n *= 2
    # TODO(synk): if F_in alone is too large for VMEM, add a K grid axis with an f32
    # accumulator scratch (pl.when init/finalize); unnecessary for policy heads.
    tile_n_v = _round_up(tile_n, _LANE)
    grid_n = _cdiv(F_out, tile_n)
    resident_bytes = isz_w * f_in_v * tile_n_v + 4 * tile_n_v

    # Batch tile: multiple of the sublane packing, no larger than (padded) B, capped
    # so there are >=2 grid steps when B allows (v7x dual-TC sharding), then shrunk
    # until the double-buffered x/out tiles fit in the remaining VMEM budget.
    tile_b = max(sublane, _round_up(min(tile_b, _round_up(B, sublane)), sublane))
    if B >= 2 * sublane:
        tile_b = min(tile_b, _round_up(_cdiv(B, 2), sublane))
    tile_budget = max(4 << 20, int(vmem_cap * 0.75) - resident_bytes)

    def _tile_bytes(tb):
        return 2 * tb * (isz_x * f_in_v + isz_o * tile_n_v)   # double-buffered x + out

    while tile_b > sublane and _tile_bytes(tile_b) > tile_budget:
        tile_b = max(sublane, _round_up(tile_b // 2, sublane))

    grid_b = _cdiv(B, tile_b)
    b_p = grid_b * tile_b
    # Pad rows only when B is not a tile multiple (no copy at all in the common case).
    x_p = x if b_p == B else jnp.zeros((b_p, F_in), x.dtype).at[:B, :].set(x)

    vmem_need = resident_bytes + _tile_bytes(tile_b) + (1 << 20)
    vmem_limit = int(min(max(2 * vmem_need, 16 << 20), int(vmem_cap * 0.9)))
    vmem_limit = max(vmem_limit, vmem_need)

    cost = pl.CostEstimate(
        flops=2 * b_p * F_in * F_out,
        transcendentals=0,
        bytes_accessed=(isz_x * b_p * F_in + isz_w * F_in * F_out
                        + 4 * F_out + isz_o * b_p * F_out),
    )

    def _run(single_buffer_params):
        if single_buffer_params and grid_n == 1:
            # Constant index_map -> single buffer for the resident weight / bias.
            w_spec = pl.BlockSpec((F_in, tile_n), lambda i, j: (0, j),
                                  pipeline_mode=pl.Buffered(1))
            b_spec = pl.BlockSpec((1, tile_n), lambda i, j: (0, j),
                                  pipeline_mode=pl.Buffered(1))
        else:
            w_spec = pl.BlockSpec((F_in, tile_n), lambda i, j: (0, j))
            b_spec = pl.BlockSpec((1, tile_n), lambda i, j: (0, j))
        return pl.pallas_call(
            _mean_kernel,
            out_shape=jax.ShapeDtypeStruct((b_p, F_out), out_dtype),
            grid_spec=pltpu.PrefetchScalarGridSpec(
                num_scalar_prefetch=0,
                grid=(grid_b, grid_n),
                in_specs=[
                    pl.BlockSpec((tile_b, F_in), lambda i, j: (i, 0)),  # x: pipelined tiles
                    w_spec,                                             # W_t: VMEM-resident
                    b_spec,                                             # bias: VMEM-resident
                ],
                out_specs=pl.BlockSpec((tile_b, tile_n), lambda i, j: (i, j)),
            ),
            compiler_params=pltpu.CompilerParams(
                dimension_semantics=("parallel", "parallel"),
                vmem_limit_bytes=vmem_limit,
            ),
            cost_estimate=cost,
        )(x_p, w_t, b_row)

    try:
        mean_p = _run(True)
    except Exception:
        # Fallback for Pallas builds that reject BlockSpec.pipeline_mode / Buffered(1).
        mean_p = _run(False)

    action_mean = mean_p if b_p == B else mean_p[:B, :]
    return action_mean, action_std


def _orthogonal_init(key, shape, gain):
    """Deterministic orthogonal init (nn.init.orthogonal_ equivalent) via QR."""
    rows, cols = shape
    n = max(rows, cols)
    a = jax.random.normal(key, (n, n), dtype=jnp.float32)
    q, r = jnp.linalg.qr(a)
    q = q * jnp.sign(jnp.diag(r))  # make deterministic/unique
    return gain * q[:rows, :cols]


if __name__ == "__main__":
    # Module config (mirrors DiagGaussian.__init__ with config dict)
    num_inputs = 32
    num_outputs = 8
    batch = 8
    actor_gain = 0.01
    std_x_coef = 1.0
    std_y_coef = 0.5

    key = jax.random.PRNGKey(0)
    k_x, k_w = jax.random.split(key)

    x = jax.random.normal(k_x, (batch, num_inputs), dtype=jnp.float32)

    # Parameters: orthogonal weight (gain = actor_gain), zero bias,
    # log_std = ones(num_outputs) * std_x_coef
    weight = _orthogonal_init(k_w, (num_outputs, num_inputs), actor_gain)
    bias = jnp.zeros((num_outputs,), dtype=jnp.float32)
    log_std = jnp.ones((num_outputs,), dtype=jnp.float32) * std_x_coef

    # One-time parameter prep (pre-transpose + bias row), outside the forward path.
    w_t, b_row = prepare_linear_params(weight, bias)

    mean, std = diag_gaussian_forward(
        x, w_t, b_row, log_std, std_x_coef=std_x_coef, std_y_coef=std_y_coef
    )
    jax.block_until_ready((mean, std))

    # Reference check in plain JAX
    ref_mean = x @ weight.T + bias
    ref_std = jax.nn.sigmoid(log_std / std_x_coef) * std_y_coef
    assert mean.shape == (batch, num_outputs)
    assert std.shape == (num_outputs,)
    assert jnp.allclose(mean, ref_mean, atol=1e-5, rtol=1e-5)
    assert jnp.allclose(std, ref_std, atol=1e-6, rtol=1e-6)

    print("KERNEL_OK")
</pallas_src>

<mosaic_0001>
module attributes {stable_mosaic.version = 11 : i64} {
  func.func @_mean_kernel(%arg0: i32, %arg1: i32, %arg2: memref<8x32xf32, #tpu.memory_space<vmem>>, %arg3: memref<32x8xf32, #tpu.memory_space<vmem>>, %arg4: memref<1x8xf32, #tpu.memory_space<vmem>>, %arg5: memref<8x8xf32, #tpu.memory_space<vmem>>) attributes {dimension_semantics = [#tpu.dimension_semantics<parallel>, #tpu.dimension_semantics<parallel>], iteration_bounds = array<i64: 1, 1>, scalar_prefetch = 0 : i64, scratch_operands = 0 : i64, tpu.core_type = #tpu.core_type<tc>, window_params = [{transform_indices = @transform_0, window_bounds = array<i64: 8, 32>}, {pipeline_mode = #tpu.pipeline_mode<synchronous>, transform_indices = @transform_1, window_bounds = array<i64: 32, 8>}, {pipeline_mode = #tpu.pipeline_mode<synchronous>, transform_indices = @transform_2, window_bounds = array<i64: 1, 8>}, {transform_indices = @transform_3, window_bounds = array<i64: 8, 8>}]} {
    %c0 = arith.constant 0 : index
    %c0_0 = arith.constant 0 : index
    %0 = vector.load %arg2[%c0, %c0_0] : memref<8x32xf32, #tpu.memory_space<vmem>>, vector<8x32xf32>
    %c0_1 = arith.constant 0 : index
    %c0_2 = arith.constant 0 : index
    %1 = vector.load %arg3[%c0_1, %c0_2] : memref<32x8xf32, #tpu.memory_space<vmem>>, vector<32x8xf32>
    %cst = arith.constant dense<0.000000e+00> : vector<8x8xf32>
    %2 = tpu.matmul %0, %1, %cst {dimension_numbers = #tpu.dot_dimension_numbers<[1], [0], [0], [1], [0, 0, 1, 1], [], []>} : vector<8x32xf32>, vector<32x8xf32>, vector<8x8xf32> -> vector<8x8xf32>
    %c0_3 = arith.constant 0 : index
    %c0_4 = arith.constant 0 : index
    %3 = vector.load %arg4[%c0_3, %c0_4] : memref<1x8xf32, #tpu.memory_space<vmem>>, vector<1x8xf32>
    %4 = vector.broadcast %3 : vector<1x8xf32> to vector<8x8xf32>
    %5 = arith.addf %2, %4 : vector<8x8xf32>
    %c0_5 = arith.constant 0 : index
    %c0_6 = arith.constant 0 : index
    %6 = vector.load %arg5[%c0_5, %c0_6] : memref<8x8xf32, #tpu.memory_space<vmem>>, vector<8x8xf32>
    tpu.vector_store %arg5[%c0_5, %c0_6], %5 {strides = array<i32>} : memref<8x8xf32, #tpu.memory_space<vmem>>, vector<8x8xf32>,
    return
  }
  func.func @transform_0(%arg0: i32, %arg1: i32) -> (i32, i32) {
    %c0_i32 = arith.constant 0 : i32
    %c0_i32_0 = arith.constant 0 : i32
    return %arg0, %c0_i32 : i32, i32
  }
  func.func @transform_1(%arg0: i32, %arg1: i32) -> (i32, i32) {
    %c0_i32 = arith.constant 0 : i32
    %c0_i32_0 = arith.constant 0 : i32
    return %c0_i32, %arg1 : i32, i32
  }
  func.func @transform_2(%arg0: i32, %arg1: i32) -> (i32, i32) {
    %c0_i32 = arith.constant 0 : i32
    %c0_i32_0 = arith.constant 0 : i32
    return %c0_i32, %arg1 : i32, i32
  }
  func.func @transform_3(%arg0: i32, %arg1: i32) -> (i32, i32) {
    %c0_i32 = arith.constant 0 : i32
    return %arg0, %arg1 : i32, i32
  }
}

module attributes {stable_mosaic.version = 11 : i64} {
  func.func @_mean_kernel(%arg0: i32, %arg1: i32, %arg2: memref<8x32xf32, #tpu.memory_space<vmem>>, %arg3: memref<32x8xf32, #tpu.memory_space<vmem>>, %arg4: memref<1x8xf32, #tpu.memory_space<vmem>>, %arg5: memref<8x8xf32, #tpu.memory_space<vmem>>) attributes {dimension_semantics = [#tpu.dimension_semantics<parallel>, #tpu.dimension_semantics<parallel>], iteration_bounds = array<i64: 1, 1>, scalar_prefetch = 0 : i64, scratch_operands = 0 : i64, tpu.core_type = #tpu.core_type<tc>, window_params = [{transform_indices = @transform_0, window_bounds = array<i64: 8, 32>}, {transform_indices = @transform_1, window_bounds = array<i64: 32, 8>}, {transform_indices = @transform_2, window_bounds = array<i64: 1, 8>}, {transform_indices = @transform_3, window_bounds = array<i64: 8, 8>}]} {
    %c0 = arith.constant 0 : index
    %c0_0 = arith.constant 0 : index
    %0 = vector.load %arg2[%c0, %c0_0] : memref<8x32xf32, #tpu.memory_space<vmem>>, vector<8x32xf32>
    %c0_1 = arith.constant 0 : index
    %c0_2 = arith.constant 0 : index
    %1 = vector.load %arg3[%c0_1, %c0_2] : memref<32x8xf32, #tpu.memory_space<vmem>>, vector<32x8xf32>
    %cst = arith.constant dense<0.000000e+00> : vector<8x8xf32>
    %2 = tpu.matmul %0, %1, %cst {dimension_numbers = #tpu.dot_dimension_numbers<[1], [0], [0], [1], [0, 0, 1, 1], [], []>} : vector<8x32xf32>, vector<32x8xf32>, vector<8x8xf32> -> vector<8x8xf32>
    %c0_3 = arith.constant 0 : index
    %c0_4 = arith.constant 0 : index
    %3 = vector.load %arg4[%c0_3, %c0_4] : memref<1x8xf32, #tpu.memory_space<vmem>>, vector<1x8xf32>
    %4 = vector.broadcast %3 : vector<1x8xf32> to vector<8x8xf32>
    %5 = arith.addf %2, %4 : vector<8x8xf32>
    %c0_5 = arith.constant 0 : index
    %c0_6 = arith.constant 0 : index
    %6 = vector.load %arg5[%c0_5, %c0_6] : memref<8x8xf32, #tpu.memory_space<vmem>>, vector<8x8xf32>
    tpu.vector_store %arg5[%c0_5, %c0_6], %5 {strides = array<i32>} : memref<8x8xf32, #tpu.memory_space<vmem>>, vector<8x8xf32>,
    return
  }
  func.func @transform_0(%arg0: i32, %arg1: i32) -> (i32, i32) {
    %c0_i32 = arith.constant 0 : i32
    %c0_i32_0 = arith.constant 0 : i32
    return %arg0, %c0_i32 : i32, i32
  }
  func.func @transform_1(%arg0: i32, %arg1: i32) -> (i32, i32) {
    %c0_i32 = arith.constant 0 : i32
    %c0_i32_0 = arith.constant 0 : i32
    return %c0_i32, %arg1 : i32, i32
  }
  func.func @transform_2(%arg0: i32, %arg1: i32) -> (i32, i32) {
    %c0_i32 = arith.constant 0 : i32
    %c0_i32_0 = arith.constant 0 : i32
    return %c0_i32, %arg1 : i32, i32
  }
  func.func @transform_3(%arg0: i32, %arg1: i32) -> (i32, i32) {
    %c0_i32 = arith.constant 0 : i32
    return %arg0, %arg1 : i32, i32
  }
}

</mosaic_0001>

<llo_original>
// kernel: tpu_custom_call.1
$region0: #{tpu_custom_call.1}
  #allocation0 [shape = 'u32[]', space=smem, size = 0x4, offset = 0x4, fixed_abs, tag = 'smem constant byte address 0x4 - core index']
  #allocation1 [shape = 'u32[144,128]{1,0:T(1,128)}', space=vmem, size = 0x12000, scoped, tag = 'internal scratch']
  %s0 = inlined_call_operand.vmem [shape: f32[8,32], index: 0, kind: input, shape index: {}]
  %s1 = inlined_call_operand.vmem [shape: f32[32,8], index: 1, kind: input, shape index: {}]
  %s2 = inlined_call_operand.vmem [shape: f32[1,8], index: 2, kind: input, shape index: {}]
  %s3 = inlined_call_operand.hbm [shape: f32[8,8], index: 3, kind: output, shape index: {}]
  %s4 = sld [smem:[#allocation0]]
  $region22: #{tpu_custom_call.1} parent=0
    _
  %s6 = ssub.s32 1, %s4
  %s7 = scalar_select 0, %s6, %s4
  $region1: #{tpu_custom_call.1} parent=0
    #allocation2 [shape = 'u8[4096]{0}', space=vmem, size = 0x1000, scoped, tag = 'output window, operand 0, single buffered']
    #allocation3 [shape = 's32[1]{0}', space=sflag, size = 0x4, scoped, tag = 'scoped memory for tpu_custom_call.1']
    %8 = vsyncpa [#allocation3], 0
    // Predicated region
    $region2: #{tpu_custom_call.1} parent=1 // pred_check
      _
    $region3: #{tpu_custom_call.1} parent=1 // pred_check_branch
      %10 = sbr.rel (0) target = $region5
    $region4: #{tpu_custom_call.1} parent=1 // pred_region
      _
    $region5: #{tpu_custom_call.1} parent=1 // pred_fallthru
      _
    // Predicated region
    $region6: #{tpu_custom_call.1} parent=1 // pred_check
      _
    $region7: #{tpu_custom_call.1} parent=1 // pred_check_branch
      %12 = sbr.rel (0) target = $region9
    $region8: #{tpu_custom_call.1} parent=1 // pred_region
      _
    $region9: #{tpu_custom_call.1} parent=1 // pred_fallthru
      _
    // Predicated region
    $region10: #{tpu_custom_call.1} parent=1 // pred_check
      _
    $region11: #{tpu_custom_call.1} parent=1 // pred_check_branch
      %14 = sbr.rel (0) target = $region13
    $region12: #{tpu_custom_call.1} parent=1 // pred_region
      _
    $region13: #{tpu_custom_call.1} parent=1 // pred_fallthru
      _
    %v15 = vld [vmem:[%s0] sm:$0xff]
    %v16 = vld [vmem:[%s1] sm:$0xff]
    %v17 = vld [vmem:[%s1 + $0x8] sm:$0xff]
    %v18 = vld [vmem:[%s1 + $0x10] sm:$0xff]
    %v19 = vld [vmem:[%s1 + $0x18] sm:$0xff]
    %v20 = vld [vmem:[%s2] sm:$0x1]
    %v22 = vlaneseq
    %v23 = vshrl.u32 %v22, 7
    %v24 = vsub.s32 0, %v23
    %v25 = vrot.slane %v20, %v24
    %vm27 = vcmask 261120
    %v29 = vsel %vm27, %v15, 0
    %31 = vmatprep.subr.mxu0 0.0
    %32 = vmatpush1.msra.mxu0 %v16
    %33 = vmatprep.subr.mxu0 0.0
    %34 = vmatpush1.msra.mxu0 %v17
    %35 = vmatprep.subr.mxu0 0.0
    %36 = vmatpush1.msra.mxu0 %v18
    %37 = vmatprep.subr.mxu0 0.0
    %38 = vmatpush1.msra.mxu0 %v19
    %39 = vmatprep.subr.mxu0 0.0
    %40 = vmatpush1.msra.mxu0 0.0
    %41 = vmatprep.subr.mxu0 0.0
    %42 = vmatpush1.msra.mxu0 0.0
    %43 = vmatprep.subr.mxu0 0.0
    %44 = vmatpush1.msra.mxu0 0.0
    %45 = vmatprep.subr.mxu0 0.0
    %46 = vmatpush1.msra.mxu0 0.0
    %47 = vmatprep.subr.mxu0 0.0
    %48 = vmatpush1.msra.mxu0 0.0
    %49 = vmatprep.subr.mxu0 0.0
    %50 = vmatpush1.msra.mxu0 0.0
    %51 = vmatprep.subr.mxu0 0.0
    %52 = vmatpush1.msra.mxu0 0.0
    %53 = vmatprep.subr.mxu0 0.0
    %54 = vmatpush1.msra.mxu0 0.0
    %55 = vmatprep.subr.mxu0 0.0
    %56 = vmatpush1.msra.mxu0 0.0
    %57 = vmatprep.subr.mxu0 0.0
    %58 = vmatpush1.msra.mxu0 0.0
    %59 = vmatprep.subr.mxu0 0.0
    %60 = vmatpush1.msra.mxu0 0.0
    %61 = vmatprep.subr.mxu0 0.0
    %62 = vmatpush1.msra.mxu0 0.0
    %63 = vmatprep.subr.mxu0 0.0
    %64 = vmatpush1.msra.mxu0 0.0
    %65 = vmatprep.subr.mxu0 0.0
    %66 = vmatpush1.msra.mxu0 0.0
    %67 = vmatprep.subr.mxu0 0.0
    %68 = vmatpush1.msra.mxu0 0.0
    %69 = vmatprep.subr.mxu0 0.0
    %70 = vmatpush1.msra.mxu0 0.0
    %71 = vmatprep.subr.mxu0 0.0
    %72 = vmatpush1.msra.mxu0 0.0
    %73 = vmatprep.subr.mxu0 0.0
    %74 = vmatpush1.msra.mxu0 0.0
    %75 = vmatprep.subr.mxu0 0.0
    %76 = vmatpush1.msra.mxu0 0.0
    %77 = vmatprep.subr.mxu0 0.0
    %78 = vmatpush1.msra.mxu0 0.0
    %79 = vmatprep.subr.mxu0 0.0
    %80 = vmatpush1.msra.mxu0 0.0
    %81 = vmatprep.subr.mxu0 0.0
    %82 = vmatpush1.msra.mxu0 0.0
    %83 = vmatprep.subr.mxu0 0.0
    %84 = vmatpush1.msra.mxu0 0.0
    %85 = vmatprep.subr.mxu0 0.0
    %86 = vmatpush1.msra.mxu0 0.0
    %87 = vmatprep.subr.mxu0 0.0
    %88 = vmatpush1.msra.mxu0 0.0
    %89 = vmatprep.subr.mxu0 0.0
    %90 = vmatpush1.msra.mxu0 0.0
    %91 = vmatprep.subr.mxu0 0.0
    %92 = vmatpush1.msra.mxu0 0.0
    %93 = vmatprep.subr.mxu0 0.0
    %94 = vmatpush1.msra.mxu0 0.0
    %95 = vmatprep.mubr.f32.mxu0 0.0
    %96 = vmatmul.mubr.f32.gmra.mrb[0].mxu0 %v29
    %v97 = vpop.f32.mrb[0].mxu0
    %v98 = vadd.f32 %v25, %v97
    %v99 = vpop.f32.mrb[0].mxu0
    %100 = vdwg.mxu0
    %vm101 = vcmask 64512
    %102 = vst.msk [vmem:[#allocation2] sm:$0xff] %vm101, %v98
    // Predicated region
    $region14: #{tpu_custom_call.1} parent=1 // pred_check
      _
    $region15: #{tpu_custom_call.1} parent=1 // pred_check_branch
      %104 = sbr.rel (0) target = $region17
    $region16: #{tpu_custom_call.1} parent=1 // pred_region
      %s106 = ssub.s32 128, 128
      %107 = vsyncadd [#allocation3], %s106
      %s109 = sshll.u32 [#allocation2], 4
      %s110 = int_to_ptr.vmem [resolvable:$true] %s109
      %112 = dma.vmem_to_hbm [thread:$0]  %s110, 128, %s3, [#allocation3]
    $region17: #{tpu_custom_call.1} parent=1 // pred_fallthru
      _
    // Predicated region
    $region18: #{tpu_custom_call.1} parent=1 // pred_check
      _
    $region19: #{tpu_custom_call.1} parent=1 // pred_check_branch
      %114 = sbr.rel (0) target = $region21
    $region20: #{tpu_custom_call.1} parent=1 // pred_region
      %115 = dma.done [#allocation3], 128
    $region21: #{tpu_custom_call.1} parent=1 // pred_fallthru
      _
    %116 = vsyncpa [#allocation3], 1

// kernel: tpu_custom_call.1
$region0: #{tpu_custom_call.1}
  #allocation0 [shape = 'u32[]', space=smem, size = 0x4, offset = 0x4, fixed_abs, tag = 'smem constant byte address 0x4 - core index']
  #allocation1 [shape = 'u32[144,128]{1,0:T(1,128)}', space=vmem, size = 0x12000, scoped, tag = 'internal scratch']
  %s0 = inlined_call_operand.vmem [shape: f32[8,32], index: 0, kind: input, shape index: {}]
  %s1 = inlined_call_operand.vmem [shape: f32[32,8], index: 1, kind: input, shape index: {}]
  %s2 = inlined_call_operand.vmem [shape: f32[1,8], index: 2, kind: input, shape index: {}]
  %s3 = inlined_call_operand.hbm [shape: f32[8,8], index: 3, kind: output, shape index: {}]
  %s4 = sld [smem:[#allocation0]]
  $region22: #{tpu_custom_call.1} parent=0
    _
  %s6 = ssub.s32 1, %s4
  %s7 = scalar_select 0, %s6, %s4
  $region1: #{tpu_custom_call.1} parent=0
    #allocation2 [shape = 'u8[4096]{0}', space=vmem, size = 0x1000, scoped, tag = 'output window, operand 0, single buffered']
    #allocation3 [shape = 's32[1]{0}', space=sflag, size = 0x4, scoped, tag = 'scoped memory for tpu_custom_call.1']
    %8 = vsyncpa [#allocation3], 0
    // Predicated region
    $region2: #{tpu_custom_call.1} parent=1 // pred_check
      _
    $region3: #{tpu_custom_call.1} parent=1 // pred_check_branch
      %10 = sbr.rel (0) target = $region5
    $region4: #{tpu_custom_call.1} parent=1 // pred_region
      _
    $region5: #{tpu_custom_call.1} parent=1 // pred_fallthru
      _
    // Predicated region
    $region6: #{tpu_custom_call.1} parent=1 // pred_check
      _
    $region7: #{tpu_custom_call.1} parent=1 // pred_check_branch
      %12 = sbr.rel (0) target = $region9
    $region8: #{tpu_custom_call.1} parent=1 // pred_region
      _
    $region9: #{tpu_custom_call.1} parent=1 // pred_fallthru
      _
    // Predicated region
    $region10: #{tpu_custom_call.1} parent=1 // pred_check
      _
    $region11: #{tpu_custom_call.1} parent=1 // pred_check_branch
      %14 = sbr.rel (0) target = $region13
    $region12: #{tpu_custom_call.1} parent=1 // pred_region
      _
    $region13: #{tpu_custom_call.1} parent=1 // pred_fallthru
      _
    %v15 = vld [vmem:[%s0] sm:$0xff]
    %v16 = vld [vmem:[%s1] sm:$0xff]
    %v17 = vld [vmem:[%s1 + $0x8] sm:$0xff]
    %v18 = vld [vmem:[%s1 + $0x10] sm:$0xff]
    %v19 = vld [vmem:[%s1 + $0x18] sm:$0xff]
    %v20 = vld [vmem:[%s2] sm:$0x1]
    %v22 = vlaneseq
    %v23 = vshrl.u32 %v22, 7
    %v24 = vsub.s32 0, %v23
    %v25 = vrot.slane %v20, %v24
    %vm27 = vcmask 261120
    %v29 = vsel %vm27, %v15, 0
    %31 = vmatprep.subr.mxu0 0.0
    %32 = vmatpush1.msra.mxu0 %v16
    %33 = vmatprep.subr.mxu0 0.0
    %34 = vmatpush1.msra.mxu0 %v17
    %35 = vmatprep.subr.mxu0 0.0
    %36 = vmatpush1.msra.mxu0 %v18
    %37 = vmatprep.subr.mxu0 0.0
    %38 = vmatpush1.msra.mxu0 %v19
    %39 = vmatprep.subr.mxu0 0.0
    %40 = vmatpush1.msra.mxu0 0.0
    %41 = vmatprep.subr.mxu0 0.0
    %42 = vmatpush1.msra.mxu0 0.0
    %43 = vmatprep.subr.mxu0 0.0
    %44 = vmatpush1.msra.mxu0 0.0
    %45 = vmatprep.subr.mxu0 0.0
    %46 = vmatpush1.msra.mxu0 0.0
    %47 = vmatprep.subr.mxu0 0.0
    %48 = vmatpush1.msra.mxu0 0.0
    %49 = vmatprep.subr.mxu0 0.0
    %50 = vmatpush1.msra.mxu0 0.0
    %51 = vmatprep.subr.mxu0 0.0
    %52 = vmatpush1.msra.mxu0 0.0
    %53 = vmatprep.subr.mxu0 0.0
    %54 = vmatpush1.msra.mxu0 0.0
    %55 = vmatprep.subr.mxu0 0.0
    %56 = vmatpush1.msra.mxu0 0.0
    %57 = vmatprep.subr.mxu0 0.0
    %58 = vmatpush1.msra.mxu0 0.0
    %59 = vmatprep.subr.mxu0 0.0
    %60 = vmatpush1.msra.mxu0 0.0
    %61 = vmatprep.subr.mxu0 0.0
    %62 = vmatpush1.msra.mxu0 0.0
    %63 = vmatprep.subr.mxu0 0.0
    %64 = vmatpush1.msra.mxu0 0.0
    %65 = vmatprep.subr.mxu0 0.0
    %66 = vmatpush1.msra.mxu0 0.0
    %67 = vmatprep.subr.mxu0 0.0
    %68 = vmatpush1.msra.mxu0 0.0
    %69 = vmatprep.subr.mxu0 0.0
    %70 = vmatpush1.msra.mxu0 0.0
    %71 = vmatprep.subr.mxu0 0.0
    %72 = vmatpush1.msra.mxu0 0.0
    %73 = vmatprep.subr.mxu0 0.0
    %74 = vmatpush1.msra.mxu0 0.0
    %75 = vmatprep.subr.mxu0 0.0
    %76 = vmatpush1.msra.mxu0 0.0
    %77 = vmatprep.subr.mxu0 0.0
    %78 = vmatpush1.msra.mxu0 0.0
    %79 = vmatprep.subr.mxu0 0.0
    %80 = vmatpush1.msra.mxu0 0.0
    %81 = vmatprep.subr.mxu0 0.0
    %82 = vmatpush1.msra.mxu0 0.0
    %83 = vmatprep.subr.mxu0 0.0
    %84 = vmatpush1.msra.mxu0 0.0
    %85 = vmatprep.subr.mxu0 0.0
    %86 = vmatpush1.msra.mxu0 0.0
    %87 = vmatprep.subr.mxu0 0.0
    %88 = vmatpush1.msra.mxu0 0.0
    %89 = vmatprep.subr.mxu0 0.0
    %90 = vmatpush1.msra.mxu0 0.0
    %91 = vmatprep.subr.mxu0 0.0
    %92 = vmatpush1.msra.mxu0 0.0
    %93 = vmatprep.subr.mxu0 0.0
    %94 = vmatpush1.msra.mxu0 0.0
    %95 = vmatprep.mubr.f32.mxu0 0.0
    %96 = vmatmul.mubr.f32.gmra.mrb[0].mxu0 %v29
    %v97 = vpop.f32.mrb[0].mxu0
    %v98 = vadd.f32 %v25, %v97
    %v99 = vpop.f32.mrb[0].mxu0
    %100 = vdwg.mxu0
    %vm101 = vcmask 64512
    %102 = vst.msk [vmem:[#allocation2] sm:$0xff] %vm101, %v98
    // Predicated region
    $region14: #{tpu_custom_call.1} parent=1 // pred_check
      _
    $region15: #{tpu_custom_call.1} parent=1 // pred_check_branch
      %104 = sbr.rel (0) target = $region17
    $region16: #{tpu_custom_call.1} parent=1 // pred_region
      %s106 = ssub.s32 128, 128
      %107 = vsyncadd [#allocation3], %s106
      %s109 = sshll.u32 [#allocation2], 4
      %s110 = int_to_ptr.vmem [resolvable:$true] %s109
      %112 = dma.vmem_to_hbm [thread:$0]  %s110, 128, %s3, [#allocation3]
    $region17: #{tpu_custom_call.1} parent=1 // pred_fallthru
      _
    // Predicated region
    $region18: #{tpu_custom_call.1} parent=1 // pred_check
      _
    $region19: #{tpu_custom_call.1} parent=1 // pred_check_branch
      %114 = sbr.rel (0) target = $region21
    $region20: #{tpu_custom_call.1} parent=1 // pred_region
      %115 = dma.done [#allocation3], 128
    $region21: #{tpu_custom_call.1} parent=1 // pred_fallthru
      _
    %116 = vsyncpa [#allocation3], 1

</llo_original>
